<compile_context>
chip_gen: v5e
topology: v5e:2x2
jax: 0.10.0
libtpu: 0.0.40
codegen_flags: <defaults>
</compile_context>

<pallas_src>
import math

import jax
import jax.numpy as jnp
from jax import lax
from jax.experimental import pallas as pl
from jax.experimental.pallas import tpu as pltpu


def qk_proj_kernel(x_ref, w_ref, b_ref, q_ref, k_ref):
    """Fused Q/K projection over a (TM, H) row tile of the flattened batch.

    x_ref : (TM, H)     rows of x for all batches (batch folded into M)
    w_ref : (H, 2H)     [wq^T * (1/sqrt(H)) | wk^T]
    b_ref : (1, 2H)     [bq   * (1/sqrt(H)) | bk  ]
    q_ref : (TM, H)     scaled query output (f32)
    k_ref : (TM, H)     key output (f32)
    """
    h = q_ref.shape[-1]
    qk = jnp.dot(x_ref[...], w_ref[...], preferred_element_type=jnp.float32)
    qk = qk + b_ref[...]
    q_ref[...] = qk[:, :h].astype(q_ref.dtype)
    k_ref[...] = qk[:, h:].astype(k_ref.dtype)


def qk_score_kernel(q_ref, k_ref, o_ref):
    """scores tile = q_tile @ k_tile^T (contraction via dot_general, no transpose).

    q_ref : (1, TQ, H)   scale already folded into q
    k_ref : (1, TK, H)
    o_ref : (1, TQ, TK)
    """
    s = lax.dot_general(
        q_ref[0], k_ref[0],
        dimension_numbers=(((1,), (1,)), ((), ())),
        preferred_element_type=jnp.float32,
    )
    o_ref[0] = s.astype(o_ref.dtype)


def _pick_tile(n, pref):
    """Largest tile: `pref` if it divides n, else full extent (always legal)."""
    if n % pref == 0:
        return pref
    return n


def query_key_dot_product(x, wq, bq, wk, bk):
    """q = x @ wq^T + bq ; k = x @ wk^T + bk ; return (q @ k^T) / sqrt(H).

    wq, wk are in PyTorch nn.Linear layout (out_features, in_features).
    """
    B, S, H = x.shape
    scale = 1.0 / math.sqrt(H)

    # Fuse Q and K projections into one weight / bias; fold the score scale
    # into the query half (wrapper-side, one-time glue).
    w_qk = jnp.concatenate([wq.T * scale, wk.T], axis=1)            # (H, 2H)
    b_qk = jnp.concatenate([bq * scale, bk]).reshape(1, 2 * H)      # (1, 2H)

    # ---- Phase 1: batched-M fused projection -------------------------------
    M = B * S
    x2d = x.reshape(M, H)
    TM = _pick_tile(M, 512)

    q2d, k2d = pl.pallas_call(
        qk_proj_kernel,
        out_shape=(
            jax.ShapeDtypeStruct((M, H), jnp.float32),
            jax.ShapeDtypeStruct((M, H), jnp.float32),
        ),
        grid_spec=pltpu.PrefetchScalarGridSpec(
            num_scalar_prefetch=0,
            grid=(M // TM,),
            in_specs=[
                pl.BlockSpec((TM, H), lambda m: (m, 0)),        # x rows
                pl.BlockSpec((H, 2 * H), lambda m: (0, 0)),     # fused weights
                pl.BlockSpec((1, 2 * H), lambda m: (0, 0)),     # fused bias
            ],
            out_specs=[
                pl.BlockSpec((TM, H), lambda m: (m, 0)),        # q
                pl.BlockSpec((TM, H), lambda m: (m, 0)),        # k
            ],
        ),
        compiler_params=pltpu.CompilerParams(
            dimension_semantics=("parallel",)),
    )(x2d, w_qk, b_qk)

    q = q2d.reshape(B, S, H)
    k = k2d.reshape(B, S, H)

    # ---- Phase 2: tiled score matmul (no explicit k transpose) -------------
    TQ = _pick_tile(S, 256)
    TK = _pick_tile(S, 256)

    scores = pl.pallas_call(
        qk_score_kernel,
        out_shape=jax.ShapeDtypeStruct((B, S, S), x.dtype),
        grid_spec=pltpu.PrefetchScalarGridSpec(
            num_scalar_prefetch=0,
            grid=(B, S // TQ, S // TK),
            in_specs=[
                pl.BlockSpec((1, TQ, H), lambda b, qi, ki: (b, qi, 0)),  # q tile
                pl.BlockSpec((1, TK, H), lambda b, qi, ki: (b, ki, 0)),  # k tile
            ],
            out_specs=pl.BlockSpec((1, TQ, TK), lambda b, qi, ki: (b, qi, ki)),
        ),
        compiler_params=pltpu.CompilerParams(
            dimension_semantics=("parallel", "parallel", "parallel")),
    )(q, k)

    return scores


if __name__ == "__main__":
    B, S, H = 2, 8, 32   # batch, seq, hidden_size

    key = jax.random.PRNGKey(0)
    k_x, k_wq, k_bq, k_wk, k_bk = jax.random.split(key, 5)

    x = jax.random.normal(k_x, (B, S, H), dtype=jnp.float32)

    # Deterministic parameter init mimicking nn.Linear's uniform(-1/sqrt(H), 1/sqrt(H)).
    bound = 1.0 / math.sqrt(H)
    wq = jax.random.uniform(k_wq, (H, H), jnp.float32, -bound, bound)  # (out, in)
    bq = jax.random.uniform(k_bq, (H,), jnp.float32, -bound, bound)
    wk = jax.random.uniform(k_wk, (H, H), jnp.float32, -bound, bound)
    bk = jax.random.uniform(k_bk, (H,), jnp.float32, -bound, bound)

    out = query_key_dot_product(x, wq, bq, wk, bk)
    out = jax.block_until_ready(out)

    # Pure-JAX reference check.
    q_ref = x @ wq.T + bq
    k_ref = x @ wk.T + bk
    ref = jnp.einsum("bsh,bth->bst", q_ref, k_ref) / math.sqrt(H)
    assert out.shape == (B, S, S)
    assert jnp.allclose(out, ref, atol=1e-4, rtol=1e-4)

    print("KERNEL_OK")
</pallas_src>

<mosaic_0001>
module attributes {stable_mosaic.version = 11 : i64} {
  func.func @qk_proj_kernel(%arg0: i32, %arg1: memref<16x32xf32, #tpu.memory_space<vmem>>, %arg2: memref<32x64xf32, #tpu.memory_space<vmem>>, %arg3: memref<1x64xf32, #tpu.memory_space<vmem>>, %arg4: memref<16x32xf32, #tpu.memory_space<vmem>>, %arg5: memref<16x32xf32, #tpu.memory_space<vmem>>) attributes {dimension_semantics = [#tpu.dimension_semantics<parallel>], iteration_bounds = array<i64: 1>, scalar_prefetch = 0 : i64, scratch_operands = 0 : i64, tpu.core_type = #tpu.core_type<tc>, window_params = [{transform_indices = @transform_0, window_bounds = array<i64: 16, 32>}, {pipeline_mode = #tpu.pipeline_mode<synchronous>, transform_indices = @transform_1, window_bounds = array<i64: 32, 64>}, {pipeline_mode = #tpu.pipeline_mode<synchronous>, transform_indices = @transform_2, window_bounds = array<i64: 1, 64>}, {transform_indices = @transform_3, window_bounds = array<i64: 16, 32>}, {transform_indices = @transform_4, window_bounds = array<i64: 16, 32>}]} {
    %c0 = arith.constant 0 : index
    %c0_0 = arith.constant 0 : index
    %0 = vector.load %arg1[%c0, %c0_0] : memref<16x32xf32, #tpu.memory_space<vmem>>, vector<16x32xf32>
    %c0_1 = arith.constant 0 : index
    %c0_2 = arith.constant 0 : index
    %1 = vector.load %arg2[%c0_1, %c0_2] : memref<32x64xf32, #tpu.memory_space<vmem>>, vector<32x64xf32>
    %cst = arith.constant dense<0.000000e+00> : vector<16x64xf32>
    %2 = tpu.matmul %0, %1, %cst {dimension_numbers = #tpu.dot_dimension_numbers<[1], [0], [0], [1], [0, 0, 1, 1], [], []>} : vector<16x32xf32>, vector<32x64xf32>, vector<16x64xf32> -> vector<16x64xf32>
    %c0_3 = arith.constant 0 : index
    %c0_4 = arith.constant 0 : index
    %3 = vector.load %arg3[%c0_3, %c0_4] : memref<1x64xf32, #tpu.memory_space<vmem>>, vector<1x64xf32>
    %4 = vector.broadcast %3 : vector<1x64xf32> to vector<16x64xf32>
    %5 = arith.addf %2, %4 : vector<16x64xf32>
    %6 = vector.extract_strided_slice %5 {offsets = [0, 0], sizes = [16, 32], strides = [1, 1]} : vector<16x64xf32> to vector<16x32xf32>
    %c0_5 = arith.constant 0 : index
    %c0_6 = arith.constant 0 : index
    %7 = vector.load %arg4[%c0_5, %c0_6] : memref<16x32xf32, #tpu.memory_space<vmem>>, vector<16x32xf32>
    tpu.vector_store %arg4[%c0_5, %c0_6], %6 {strides = array<i32>} : memref<16x32xf32, #tpu.memory_space<vmem>>, vector<16x32xf32>,
    %8 = vector.extract_strided_slice %5 {offsets = [0, 32], sizes = [16, 32], strides = [1, 1]} : vector<16x64xf32> to vector<16x32xf32>
    %c0_7 = arith.constant 0 : index
    %c0_8 = arith.constant 0 : index
    %9 = vector.load %arg5[%c0_7, %c0_8] : memref<16x32xf32, #tpu.memory_space<vmem>>, vector<16x32xf32>
    tpu.vector_store %arg5[%c0_7, %c0_8], %8 {strides = array<i32>} : memref<16x32xf32, #tpu.memory_space<vmem>>, vector<16x32xf32>,
    return
  }
  func.func @transform_0(%arg0: i32) -> (i32, i32) {
    %c0_i32 = arith.constant 0 : i32
    %c0_i32_0 = arith.constant 0 : i32
    return %arg0, %c0_i32 : i32, i32
  }
  func.func @transform_1(%arg0: i32) -> (i32, i32) {
    %c0_i32 = arith.constant 0 : i32
    %c0_i32_0 = arith.constant 0 : i32
    %c0_i32_1 = arith.constant 0 : i32
    return %c0_i32, %c0_i32_0 : i32, i32
  }
  func.func @transform_2(%arg0: i32) -> (i32, i32) {
    %c0_i32 = arith.constant 0 : i32
    %c0_i32_0 = arith.constant 0 : i32
    %c0_i32_1 = arith.constant 0 : i32
    return %c0_i32, %c0_i32_0 : i32, i32
  }
  func.func @transform_3(%arg0: i32) -> (i32, i32) {
    %c0_i32 = arith.constant 0 : i32
    %c0_i32_0 = arith.constant 0 : i32
    return %arg0, %c0_i32 : i32, i32
  }
  func.func @transform_4(%arg0: i32) -> (i32, i32) {
    %c0_i32 = arith.constant 0 : i32
    %c0_i32_0 = arith.constant 0 : i32
    return %arg0, %c0_i32 : i32, i32
  }
}

</mosaic_0001>

<llo_original>
// kernel: tpu_custom_call.1
$region0: #{tpu_custom_call.1}
  #allocation0 [shape = 'u32[]', space=smem, size = 0x4, offset = 0x4, fixed_abs, tag = 'smem constant byte address 0x4 - core index']
  #allocation1 [shape = 'u32[72,128]{1,0:T(1,128)}', space=vmem, size = 0x9000, scoped, tag = 'internal scratch']
  %s0 = inlined_call_operand.hbm [shape: f32[16,32], index: 0, kind: input, shape index: {}]
  %s1 = inlined_call_operand.hbm [shape: f32[32,64], index: 1, kind: input, shape index: {}]
  %s2 = inlined_call_operand.vmem [shape: f32[1,64], index: 2, kind: input, shape index: {}]
  %s3 = inlined_call_operand.hbm [shape: f32[16,32], index: 3, kind: output, shape index: {0}]
  %s4 = inlined_call_operand.hbm [shape: f32[16,32], index: 4, kind: output, shape index: {1}]
  %5 = xla_tuple %s3, %s4
  %s6 = sld [smem:[#allocation0]]
  $region38: #{tpu_custom_call.1} parent=0
    _
  %s8 = ssub.s32 1, %s6
  %s9 = scalar_select 0, %s8, %s6
  $region1: #{tpu_custom_call.1} parent=0
    #allocation2 [shape = 'u8[8192]{0}', space=vmem, size = 0x2000, scoped, tag = 'input window, operand 0, single buffered']
    #allocation3 [shape = 's32[1]{0}', space=sflag, size = 0x4, scoped, tag = 'scoped memory for tpu_custom_call.1']
    #allocation4 [shape = 's32[1]{0}', space=sflag, size = 0x4, scoped, tag = 'scoped memory for tpu_custom_call.1']
    #allocation5 [shape = 'u8[16384]{0}', space=vmem, size = 0x4000, scoped, tag = 'input window, operand 1, single buffered']
    #allocation6 [shape = 's32[1]{0}', space=sflag, size = 0x4, scoped, tag = 'scoped memory for tpu_custom_call.1']
    #allocation7 [shape = 'u8[8192]{0}', space=vmem, size = 0x2000, scoped, tag = 'output window, operand 0, single buffered']
    #allocation8 [shape = 'u8[8192]{0}', space=vmem, size = 0x2000, scoped, tag = 'output window, operand 1, single buffered']
    #allocation9 [shape = 's32[1]{0}', space=sflag, size = 0x4, scoped, tag = 'scoped memory for tpu_custom_call.1']
    %10 = vsyncpa [#allocation3], 0
    %11 = vsyncpa [#allocation6], 0
    %12 = vsyncpa [#allocation4], 0
    %13 = vsyncpa [#allocation9], 0
    // Predicated region
    $region2: #{tpu_custom_call.1} parent=1 // pred_check
      _
    $region3: #{tpu_custom_call.1} parent=1 // pred_check_branch
      %15 = sbr.rel (0) target = $region5
    $region4: #{tpu_custom_call.1} parent=1 // pred_region
      %17 = vsyncadd [#allocation3], 0
      %s18 = sshll.u32 %s0, 4
      %s19 = int_to_ptr.hbm [resolvable:$true] %s18
      %s20 = sshll.u32 [#allocation2], 4
      %s21 = int_to_ptr.vmem [resolvable:$true] %s20
      %26 = dma.hbm_to_vmem [thread:$0]  %s19, 256, %s21, [#allocation3], 128, 128, 8
    $region5: #{tpu_custom_call.1} parent=1 // pred_fallthru
      _
    // Predicated region
    $region6: #{tpu_custom_call.1} parent=1 // pred_check
      _
    $region7: #{tpu_custom_call.1} parent=1 // pred_check_branch
      %28 = sbr.rel (0) target = $region9
    $region8: #{tpu_custom_call.1} parent=1 // pred_region
      %30 = vsyncadd [#allocation6], 0
      %s31 = sshll.u32 %s1, 4
      %s32 = int_to_ptr.hbm [resolvable:$true] %s31
      %s33 = sshll.u32 [#allocation5], 4
      %s34 = int_to_ptr.vmem [resolvable:$true] %s33
      %39 = dma.hbm_to_vmem [thread:$0]  %s32, 512, %s34, [#allocation6], 128, 128, 8
    $region9: #{tpu_custom_call.1} parent=1 // pred_fallthru
      _
    // Predicated region
    $region10: #{tpu_custom_call.1} parent=1 // pred_check
      _
    $region11: #{tpu_custom_call.1} parent=1 // pred_check_branch
      %41 = sbr.rel (0) target = $region13
    $region12: #{tpu_custom_call.1} parent=1 // pred_region
      _
    $region13: #{tpu_custom_call.1} parent=1 // pred_fallthru
      _
    // Predicated region
    $region14: #{tpu_custom_call.1} parent=1 // pred_check
      _
    $region15: #{tpu_custom_call.1} parent=1 // pred_check_branch
      %43 = sbr.rel (0) target = $region17
    $region16: #{tpu_custom_call.1} parent=1 // pred_region
      %45 = dma.done [#allocation3], 256
    $region17: #{tpu_custom_call.1} parent=1 // pred_fallthru
      _
    // Predicated region
    $region18: #{tpu_custom_call.1} parent=1 // pred_check
      _
    $region19: #{tpu_custom_call.1} parent=1 // pred_check_branch
      %47 = sbr.rel (0) target = $region21
    $region20: #{tpu_custom_call.1} parent=1 // pred_region
      %49 = dma.done [#allocation6], 512
    $region21: #{tpu_custom_call.1} parent=1 // pred_fallthru
      _
    %v50 = vld [vmem:[#allocation2] sm:$0xff]
    %v51 = vld [vmem:[#allocation2 + $0x8] sm:$0xff]
    %v52 = vld [vmem:[#allocation5] sm:$0xff]
    %v53 = vld [vmem:[#allocation5 + $0x8] sm:$0xff]
    %v54 = vld [vmem:[#allocation5 + $0x10] sm:$0xff]
    %v55 = vld [vmem:[#allocation5 + $0x18] sm:$0xff]
    %v56 = vld [vmem:[%s2] sm:$0x1]
    %v58 = vperm.slane %v56, 0
    %vm60 = vcmask 261120
    %v62 = vsel %vm60, %v50, 0
    %v65 = vsel %vm60, %v51, 0
    %67 = vmatpush.msra.mxu0 0.0
    %68 = vmatpush.msra.mxu0 0.0
    %69 = vmatpush.msra.mxu0 0.0
    %70 = vmatpush.msra.mxu0 0.0
    %71 = vmatpush.msra.mxu0 0.0
    %72 = vmatpush.msra.mxu0 0.0
    %73 = vmatpush.msra.mxu0 0.0
    %74 = vmatpush.msra.mxu0 0.0
    %75 = vmatpush.msra.mxu0 0.0
    %76 = vmatpush.msra.mxu0 0.0
    %77 = vmatpush.msra.mxu0 0.0
    %78 = vmatpush.msra.mxu0 0.0
    %79 = vmatpush.msra.mxu0 %v55
    %80 = vmatpush.msra.mxu0 %v54
    %81 = vmatpush.msra.mxu0 %v53
    %82 = vmatpush.msra.mxu0 %v52
    %83 = vmatmul.f32.gmra.mxu0 %v62
    %v84 = vpop.f32.mrf.mxu0
    %v85 = vadd.f32 %v58, %v84
    %86 = vmatmul.f32.gmra.mxu0 %v65
    %v87 = vpop.f32.mrf.mxu0
    %v88 = vadd.f32 %v58, %v87
    %89 = vdwg.mxu0
    %90 = vst.msk [vmem:[#allocation7] sm:$0xff] %vm60, %v85
    %91 = vst.msk [vmem:[#allocation7 + $0x8] sm:$0xff] %vm60, %v88
    %94 = vrot.lane.b32.xlu0 %v85, 96
    %v95 = vpop.permute.xlu0 %94
    %96 = vrot.lane.b32.xlu0 %v88, 96
    %v97 = vpop.permute.xlu0 %96
    %100 = vst.msk [vmem:[#allocation8] sm:$0xff] %vm60, %v95
    %101 = vst.msk [vmem:[#allocation8 + $0x8] sm:$0xff] %vm60, %v97
    // Predicated region
    $region22: #{tpu_custom_call.1} parent=1 // pred_check
      _
    $region23: #{tpu_custom_call.1} parent=1 // pred_check_branch
      %103 = sbr.rel (0) target = $region25
    $region24: #{tpu_custom_call.1} parent=1 // pred_region
      %105 = vsyncadd [#allocation4], 0
      %s106 = sshll.u32 [#allocation7], 4
      %s107 = int_to_ptr.vmem [resolvable:$true] %s106
      %s108 = sshll.u32 %s3, 4
      %s109 = int_to_ptr.hbm [resolvable:$true] %s108
      %114 = dma.vmem_to_hbm [thread:$0]  %s107, 256, %s109, [#allocation4], 128, 128, 8
    $region25: #{tpu_custom_call.1} parent=1 // pred_fallthru
      _
    // Predicated region
    $region26: #{tpu_custom_call.1} parent=1 // pred_check
      _
    $region27: #{tpu_custom_call.1} parent=1 // pred_check_branch
      %116 = sbr.rel (0) target = $region29
    $region28: #{tpu_custom_call.1} parent=1 // pred_region
      %118 = vsyncadd [#allocation9], 0
      %s119 = sshll.u32 [#allocation8], 4
      %s120 = int_to_ptr.vmem [resolvable:$true] %s119
      %s121 = sshll.u32 %s4, 4
      %s122 = int_to_ptr.hbm [resolvable:$true] %s121
      %127 = dma.vmem_to_hbm [thread:$0]  %s120, 256, %s122, [#allocation9], 128, 128, 8
    $region29: #{tpu_custom_call.1} parent=1 // pred_fallthru
      _
    // Predicated region
    $region30: #{tpu_custom_call.1} parent=1 // pred_check
      _
    $region31: #{tpu_custom_call.1} parent=1 // pred_check_branch
      %129 = sbr.rel (0) target = $region33
    $region32: #{tpu_custom_call.1} parent=1 // pred_region
      %131 = dma.done [#allocation4], 256
    $region33: #{tpu_custom_call.1} parent=1 // pred_fallthru
      _
    // Predicated region
    $region34: #{tpu_custom_call.1} parent=1 // pred_check
      _
    $region35: #{tpu_custom_call.1} parent=1 // pred_check_branch
      %133 = sbr.rel (0) target = $region37
    $region36: #{tpu_custom_call.1} parent=1 // pred_region
      %135 = dma.done [#allocation9], 256
    $region37: #{tpu_custom_call.1} parent=1 // pred_fallthru
      _
    %136 = vsyncpa [#allocation3], 1
    %137 = vsyncpa [#allocation6], 1
    %138 = vsyncpa [#allocation4], 1
    %139 = vsyncpa [#allocation9], 1

</llo_original>
